<compile_context>
chip_gen: v7x
topology: tpu7x:2x2x1
jax: 0.10.0
libtpu: 0.0.40
codegen_flags: <defaults>
</compile_context>

<pallas_src>
import math
from functools import partial

import jax
import jax.numpy as jnp
from jax import lax
from jax.experimental import pallas as pl
from jax.experimental.pallas import tpu as pltpu


# ---------------------------------------------------------------------------
# Kernel
# ---------------------------------------------------------------------------
def _gelu_exact(x):
    # PyTorch nn.GELU() default = exact erf-based GELU (f32 math).
    return 0.5 * x * (1.0 + lax.erf(x * (1.0 / math.sqrt(2.0))))


def _ffnet_kernel(n_layers, skip_connection, *refs):
    # refs = (x_ref, w0, b0, w1, b1, ..., w_{L-1}, b_{L-1}, out_ref)
    x_ref = refs[0]
    out_ref = refs[-1]
    param_refs = refs[1:-1]

    # Read the activation tile once; reused for layer 0 and the skip add.
    x0 = x_ref[...].astype(jnp.float32)

    h = x0
    for layer in range(n_layers):
        w_ref = param_refs[2 * layer]       # (d_in_pad, d_out_pad), bf16
        b_ref = param_refs[2 * layer + 1]   # (1, d_out_pad), f32
        h = _gelu_exact(h)
        # bf16 inputs on the MXU, f32 accumulate.
        h = jnp.dot(h.astype(jnp.bfloat16), w_ref[...],
                    preferred_element_type=jnp.float32)
        h = h + b_ref[...]                  # broadcasts over batch rows

    if skip_connection:
        h = h + x0

    out_ref[...] = h.astype(out_ref.dtype)


# ---------------------------------------------------------------------------
# Wrapper
# ---------------------------------------------------------------------------
def _round_up(n, m):
    return ((n + m - 1) // m) * m


def ffnet_forward(x, weights, biases, skip_connection=False, tile_b=256):
    """x: (B, in_dim); weights[i]: (d_in_i, d_out_i); biases[i]: (d_out_i,).

    Weight layout is (D_in, D_out) = transpose of PyTorch nn.Linear.weight.
    """
    n_layers = len(weights)
    B, in_dim = x.shape
    out_dim = weights[-1].shape[1]
    if skip_connection:
        assert out_dim == in_dim, "skip connection requires out_dim == in_dim"

    # ---- pad feature dims to lane width (128) ------------------------------
    dims = [in_dim] + [w.shape[1] for w in weights]
    dims_pad = [_round_up(d, 128) for d in dims]

    x_p = jnp.zeros((0,), x.dtype)  # placeholder (reassigned below)
    # ---- batch tiling -------------------------------------------------------
    tile_b = max(8, _round_up(min(tile_b, _round_up(B, 8)), 8))
    B_pad = _round_up(B, tile_b)
    n_tiles = B_pad // tile_b

    x_p = jnp.zeros((B_pad, dims_pad[0]), x.dtype).at[:B, :in_dim].set(x)

    weights_p, biases_p = [], []
    for i, (w, b) in enumerate(zip(weights, biases)):
        d_in, d_out = w.shape
        w_p = jnp.zeros((dims_pad[i], dims_pad[i + 1]), jnp.bfloat16)
        w_p = w_p.at[:d_in, :d_out].set(w.astype(jnp.bfloat16))
        b_p = jnp.zeros((1, dims_pad[i + 1]), jnp.float32)
        b_p = b_p.at[0, :d_out].set(b.astype(jnp.float32))
        weights_p.append(w_p)
        biases_p.append(b_p)

    # ---- specs --------------------------------------------------------------
    in_specs = [pl.BlockSpec((tile_b, dims_pad[0]), lambda i: (i, 0))]  # x tile
    args = [x_p]
    for i, (w_p, b_p) in enumerate(zip(weights_p, biases_p)):
        # Constant index_map -> params stay VMEM-resident across grid steps.
        in_specs.append(pl.BlockSpec(w_p.shape, lambda i: (0, 0)))
        in_specs.append(pl.BlockSpec(b_p.shape, lambda i: (0, 0)))
        args.append(w_p)
        args.append(b_p)

    out_spec = pl.BlockSpec((tile_b, dims_pad[-1]), lambda i: (i, 0))

    # ---- VMEM budget estimate (double-buffered tiles + resident params) -----
    itemsize_x = jnp.dtype(x.dtype).itemsize
    tile_x_bytes = tile_b * dims_pad[0] * itemsize_x
    tile_o_bytes = tile_b * dims_pad[-1] * itemsize_x
    param_bytes = sum(int(w.size) * 2 for w in weights_p) + \
                  sum(int(b.size) * 4 for b in biases_p)
    interm_bytes = 4 * tile_b * max(dims_pad) * 4  # f32 intermediates headroom
    vmem_limit = int(1.5 * (2 * tile_x_bytes + 2 * tile_o_bytes
                            + 2 * param_bytes + interm_bytes)) + (4 << 20)
    vmem_limit = min(max(vmem_limit, 16 << 20), 56 << 20)  # safe on v5e/v6e/v7x

    kernel = partial(_ffnet_kernel, n_layers, skip_connection)

    out_p = pl.pallas_call(
        kernel,
        out_shape=jax.ShapeDtypeStruct((B_pad, dims_pad[-1]), x.dtype),
        grid=(n_tiles,),
        in_specs=in_specs,
        out_specs=out_spec,
        compiler_params=pltpu.CompilerParams(
            dimension_semantics=("parallel",),
            vmem_limit_bytes=vmem_limit,
        ),
    )(*args)

    return out_p[:B, :out_dim]


# ---------------------------------------------------------------------------
# Deterministic parameter init (mirrors nn.Linear default init shapes)
# ---------------------------------------------------------------------------
def init_ffnet_params(key, in_dim, out_dim, hidden_ff_out_dims):
    dims_out = list(hidden_ff_out_dims) + [out_dim]
    weights, biases = [], []
    last = in_dim
    for d_out in dims_out:
        key, kw, kb = jax.random.split(key, 3)
        bound = 1.0 / math.sqrt(last)
        # Stored as (d_in, d_out) = transpose of PyTorch's (d_out, d_in).
        w = jax.random.uniform(kw, (last, d_out), jnp.float32, -bound, bound)
        b = jax.random.uniform(kb, (d_out,), jnp.float32, -bound, bound)
        weights.append(w)
        biases.append(b)
        last = d_out
    return weights, biases


def ffnet_reference(x, weights, biases, skip_connection=False, bf16_weights=True):
    """Pure-JAX reference. With bf16_weights=True it mirrors the kernel's
    bf16-input / f32-accumulate matmuls exactly."""
    h = x.astype(jnp.float32)
    for w, b in zip(weights, biases):
        h = jax.nn.gelu(h, approximate=False)
        if bf16_weights:
            h = jnp.dot(h.astype(jnp.bfloat16), w.astype(jnp.bfloat16),
                        preferred_element_type=jnp.float32)
        else:
            h = jnp.dot(h, w, preferred_element_type=jnp.float32)
        h = h + b.astype(jnp.float32)
    if skip_connection:
        h = h + x.astype(jnp.float32)
    return h.astype(x.dtype)


# ---------------------------------------------------------------------------
if __name__ == "__main__":
    key = jax.random.PRNGKey(0)
    B, in_dim, out_dim = 8, 32, 32
    hidden_ff_out_dims = [64, 64]
    skip_connection = True

    key, kx = jax.random.split(key)
    x = jax.random.normal(kx, (B, in_dim), jnp.float32)

    weights, biases = init_ffnet_params(key, in_dim, out_dim, hidden_ff_out_dims)

    out = ffnet_forward(x, weights, biases, skip_connection=skip_connection)
    out = jax.block_until_ready(out)

    # Kernel-matched reference (bf16 matmul inputs, f32 accumulate).
    ref = ffnet_reference(x, weights, biases, skip_connection=skip_connection,
                          bf16_weights=True)
    assert out.shape == (B, out_dim)
    assert jnp.allclose(out, ref, atol=1e-3, rtol=1e-3), "mismatch vs reference"

    # Sanity vs full-f32 reference (looser tolerance due to bf16 weights).
    ref_f32 = ffnet_reference(x, weights, biases, skip_connection=skip_connection,
                              bf16_weights=False)
    assert jnp.allclose(out, ref_f32, atol=3e-2, rtol=3e-2), "drift vs f32 reference"

    print("KERNEL_OK")
</pallas_src>

<mosaic_0001>
module attributes {stable_mosaic.version = 11 : i64} {
  func.func @_ffnet_kernel(%arg0: i32, %arg1: memref<8x128xf32, #tpu.memory_space<vmem>>, %arg2: memref<128x128xbf16, #tpu.memory_space<vmem>>, %arg3: memref<1x128xf32, #tpu.memory_space<vmem>>, %arg4: memref<128x128xbf16, #tpu.memory_space<vmem>>, %arg5: memref<1x128xf32, #tpu.memory_space<vmem>>, %arg6: memref<128x128xbf16, #tpu.memory_space<vmem>>, %arg7: memref<1x128xf32, #tpu.memory_space<vmem>>, %arg8: memref<8x128xf32, #tpu.memory_space<vmem>>) attributes {dimension_semantics = [#tpu.dimension_semantics<parallel>], iteration_bounds = array<i64: 1>, scalar_prefetch = 0 : i64, scratch_operands = 0 : i64, tpu.core_type = #tpu.core_type<tc>, window_params = [{transform_indices = @transform_0, window_bounds = array<i64: 8, 128>}, {pipeline_mode = #tpu.pipeline_mode<synchronous>, transform_indices = @transform_1, window_bounds = array<i64: 128, 128>}, {pipeline_mode = #tpu.pipeline_mode<synchronous>, transform_indices = @transform_2, window_bounds = array<i64: 1, 128>}, {pipeline_mode = #tpu.pipeline_mode<synchronous>, transform_indices = @transform_3, window_bounds = array<i64: 128, 128>}, {pipeline_mode = #tpu.pipeline_mode<synchronous>, transform_indices = @transform_4, window_bounds = array<i64: 1, 128>}, {pipeline_mode = #tpu.pipeline_mode<synchronous>, transform_indices = @transform_5, window_bounds = array<i64: 128, 128>}, {pipeline_mode = #tpu.pipeline_mode<synchronous>, transform_indices = @transform_6, window_bounds = array<i64: 1, 128>}, {transform_indices = @transform_7, window_bounds = array<i64: 8, 128>}]} {
    %c0 = arith.constant 0 : index
    %c0_0 = arith.constant 0 : index
    %0 = vector.load %arg1[%c0, %c0_0] : memref<8x128xf32, #tpu.memory_space<vmem>>, vector<8x128xf32>
    %cst = arith.constant 5.000000e-01 : f32
    %1 = vector.broadcast %cst : f32 to vector<8x128xf32>
    %2 = arith.mulf %1, %0 : vector<8x128xf32>
    %cst_1 = arith.constant 0.707106769 : f32
    %3 = vector.broadcast %cst_1 : f32 to vector<8x128xf32>
    %4 = arith.mulf %0, %3 : vector<8x128xf32>
    %5 = math.erf %4 : vector<8x128xf32>
    %cst_2 = arith.constant 1.000000e+00 : f32
    %6 = vector.broadcast %cst_2 : f32 to vector<8x128xf32>
    %7 = arith.addf %6, %5 : vector<8x128xf32>
    %8 = arith.mulf %2, %7 : vector<8x128xf32>
    %9 = arith.truncf %8 : vector<8x128xf32> to vector<8x128xbf16>
    %c0_3 = arith.constant 0 : index
    %c0_4 = arith.constant 0 : index
    %10 = vector.load %arg2[%c0_3, %c0_4] : memref<128x128xbf16, #tpu.memory_space<vmem>>, vector<128x128xbf16>
    %cst_5 = arith.constant dense<0.000000e+00> : vector<8x128xf32>
    %11 = tpu.matmul %9, %10, %cst_5 {dimension_numbers = #tpu.dot_dimension_numbers<[1], [0], [0], [1], [0, 0, 1, 1], [], []>} : vector<8x128xbf16>, vector<128x128xbf16>, vector<8x128xf32> -> vector<8x128xf32>
    %c0_6 = arith.constant 0 : index
    %c0_7 = arith.constant 0 : index
    %12 = vector.load %arg3[%c0_6, %c0_7] : memref<1x128xf32, #tpu.memory_space<vmem>>, vector<1x128xf32>
    %13 = vector.broadcast %12 : vector<1x128xf32> to vector<8x128xf32>
    %14 = arith.addf %11, %13 : vector<8x128xf32>
    %cst_8 = arith.constant 5.000000e-01 : f32
    %15 = vector.broadcast %cst_8 : f32 to vector<8x128xf32>
    %16 = arith.mulf %15, %14 : vector<8x128xf32>
    %cst_9 = arith.constant 0.707106769 : f32
    %17 = vector.broadcast %cst_9 : f32 to vector<8x128xf32>
    %18 = arith.mulf %14, %17 : vector<8x128xf32>
    %19 = math.erf %18 : vector<8x128xf32>
    %cst_10 = arith.constant 1.000000e+00 : f32
    %20 = vector.broadcast %cst_10 : f32 to vector<8x128xf32>
    %21 = arith.addf %20, %19 : vector<8x128xf32>
    %22 = arith.mulf %16, %21 : vector<8x128xf32>
    %23 = arith.truncf %22 : vector<8x128xf32> to vector<8x128xbf16>
    %c0_11 = arith.constant 0 : index
    %c0_12 = arith.constant 0 : index
    %24 = vector.load %arg4[%c0_11, %c0_12] : memref<128x128xbf16, #tpu.memory_space<vmem>>, vector<128x128xbf16>
    %cst_13 = arith.constant dense<0.000000e+00> : vector<8x128xf32>
    %25 = tpu.matmul %23, %24, %cst_13 {dimension_numbers = #tpu.dot_dimension_numbers<[1], [0], [0], [1], [0, 0, 1, 1], [], []>} : vector<8x128xbf16>, vector<128x128xbf16>, vector<8x128xf32> -> vector<8x128xf32>
    %c0_14 = arith.constant 0 : index
    %c0_15 = arith.constant 0 : index
    %26 = vector.load %arg5[%c0_14, %c0_15] : memref<1x128xf32, #tpu.memory_space<vmem>>, vector<1x128xf32>
    %27 = vector.broadcast %26 : vector<1x128xf32> to vector<8x128xf32>
    %28 = arith.addf %25, %27 : vector<8x128xf32>
    %cst_16 = arith.constant 5.000000e-01 : f32
    %29 = vector.broadcast %cst_16 : f32 to vector<8x128xf32>
    %30 = arith.mulf %29, %28 : vector<8x128xf32>
    %cst_17 = arith.constant 0.707106769 : f32
    %31 = vector.broadcast %cst_17 : f32 to vector<8x128xf32>
    %32 = arith.mulf %28, %31 : vector<8x128xf32>
    %33 = math.erf %32 : vector<8x128xf32>
    %cst_18 = arith.constant 1.000000e+00 : f32
    %34 = vector.broadcast %cst_18 : f32 to vector<8x128xf32>
    %35 = arith.addf %34, %33 : vector<8x128xf32>
    %36 = arith.mulf %30, %35 : vector<8x128xf32>
    %37 = arith.truncf %36 : vector<8x128xf32> to vector<8x128xbf16>
    %c0_19 = arith.constant 0 : index
    %c0_20 = arith.constant 0 : index
    %38 = vector.load %arg6[%c0_19, %c0_20] : memref<128x128xbf16, #tpu.memory_space<vmem>>, vector<128x128xbf16>
    %cst_21 = arith.constant dense<0.000000e+00> : vector<8x128xf32>
    %39 = tpu.matmul %37, %38, %cst_21 {dimension_numbers = #tpu.dot_dimension_numbers<[1], [0], [0], [1], [0, 0, 1, 1], [], []>} : vector<8x128xbf16>, vector<128x128xbf16>, vector<8x128xf32> -> vector<8x128xf32>
    %c0_22 = arith.constant 0 : index
    %c0_23 = arith.constant 0 : index
    %40 = vector.load %arg7[%c0_22, %c0_23] : memref<1x128xf32, #tpu.memory_space<vmem>>, vector<1x128xf32>
    %41 = vector.broadcast %40 : vector<1x128xf32> to vector<8x128xf32>
    %42 = arith.addf %39, %41 : vector<8x128xf32>
    %43 = arith.addf %42, %0 : vector<8x128xf32>
    %c0_24 = arith.constant 0 : index
    %c0_25 = arith.constant 0 : index
    %44 = vector.load %arg8[%c0_24, %c0_25] : memref<8x128xf32, #tpu.memory_space<vmem>>, vector<8x128xf32>
    tpu.vector_store %arg8[%c0_24, %c0_25], %43 {strides = array<i32>} : memref<8x128xf32, #tpu.memory_space<vmem>>, vector<8x128xf32>,
    return
  }
  func.func @transform_0(%arg0: i32) -> (i32, i32) {
    %c0_i32 = arith.constant 0 : i32
    %c0_i32_0 = arith.constant 0 : i32
    return %arg0, %c0_i32 : i32, i32
  }
  func.func @transform_1(%arg0: i32) -> (i32, i32) {
    %c0_i32 = arith.constant 0 : i32
    %c0_i32_0 = arith.constant 0 : i32
    %c0_i32_1 = arith.constant 0 : i32
    return %c0_i32, %c0_i32_0 : i32, i32
  }
  func.func @transform_2(%arg0: i32) -> (i32, i32) {
    %c0_i32 = arith.constant 0 : i32
    %c0_i32_0 = arith.constant 0 : i32
    %c0_i32_1 = arith.constant 0 : i32
    return %c0_i32, %c0_i32_0 : i32, i32
  }
  func.func @transform_3(%arg0: i32) -> (i32, i32) {
    %c0_i32 = arith.constant 0 : i32
    %c0_i32_0 = arith.constant 0 : i32
    %c0_i32_1 = arith.constant 0 : i32
    return %c0_i32, %c0_i32_0 : i32, i32
  }
  func.func @transform_4(%arg0: i32) -> (i32, i32) {
    %c0_i32 = arith.constant 0 : i32
    %c0_i32_0 = arith.constant 0 : i32
    %c0_i32_1 = arith.constant 0 : i32
    return %c0_i32, %c0_i32_0 : i32, i32
  }
  func.func @transform_5(%arg0: i32) -> (i32, i32) {
    %c0_i32 = arith.constant 0 : i32
    %c0_i32_0 = arith.constant 0 : i32
    %c0_i32_1 = arith.constant 0 : i32
    return %c0_i32, %c0_i32_0 : i32, i32
  }
  func.func @transform_6(%arg0: i32) -> (i32, i32) {
    %c0_i32 = arith.constant 0 : i32
    %c0_i32_0 = arith.constant 0 : i32
    %c0_i32_1 = arith.constant 0 : i32
    return %c0_i32, %c0_i32_0 : i32, i32
  }
  func.func @transform_7(%arg0: i32) -> (i32, i32) {
    %c0_i32 = arith.constant 0 : i32
    %c0_i32_0 = arith.constant 0 : i32
    return %arg0, %c0_i32 : i32, i32
  }
}

</mosaic_0001>

<llo_original>
// kernel: tpu_custom_call.1
$region0: #{tpu_custom_call.1}
  #allocation0 [shape = 'u32[]', space=smem, size = 0x4, offset = 0x4, fixed_abs, tag = 'smem constant byte address 0x4 - core index']
  #allocation1 [shape = 'u32[144,128]{1,0:T(1,128)}', space=vmem, size = 0x12000, scoped, tag = 'internal scratch']
  %s0 = inlined_call_operand.hbm [shape: f32[8,128], index: 0, kind: input, shape index: {}]
  %s1 = inlined_call_operand.hbm [shape: bf16[128,128], index: 1, kind: input, shape index: {}]
  %s2 = inlined_call_operand.vmem [shape: f32[1,128], index: 2, kind: input, shape index: {}]
  %s3 = inlined_call_operand.hbm [shape: bf16[128,128], index: 3, kind: input, shape index: {}]
  %s4 = inlined_call_operand.vmem [shape: f32[1,128], index: 4, kind: input, shape index: {}]
  %s5 = inlined_call_operand.hbm [shape: bf16[128,128], index: 5, kind: input, shape index: {}]
  %s6 = inlined_call_operand.vmem [shape: f32[1,128], index: 6, kind: input, shape index: {}]
  %s7 = inlined_call_operand.hbm [shape: f32[8,128], index: 7, kind: output, shape index: {}]
  %s8 = sld [smem:[#allocation0]]
  $region54: #{tpu_custom_call.1} parent=0
    _
  %s10 = ssub.s32 1, %s8
  %s11 = scalar_select 0, %s10, %s8
  $region1: #{tpu_custom_call.1} parent=0
    #allocation2 [shape = 'u8[4096]{0}', space=vmem, size = 0x1000, scoped, tag = 'input window, operand 0, single buffered']
    #allocation3 [shape = 's32[1]{0}', space=sflag, size = 0x4, scoped, tag = 'scoped memory for tpu_custom_call.1']
    #allocation4 [shape = 's32[1]{0}', space=sflag, size = 0x4, scoped, tag = 'scoped memory for tpu_custom_call.1']
    #allocation5 [shape = 'u8[32768]{0}', space=vmem, size = 0x8000, scoped, tag = 'input window, operand 1, single buffered']
    #allocation6 [shape = 's32[1]{0}', space=sflag, size = 0x4, scoped, tag = 'scoped memory for tpu_custom_call.1']
    #allocation7 [shape = 'u8[32768]{0}', space=vmem, size = 0x8000, scoped, tag = 'input window, operand 3, single buffered']
    #allocation8 [shape = 'u8[32768]{0}', space=vmem, size = 0x8000, scoped, tag = 'input window, operand 5, single buffered']
    #allocation9 [shape = 's32[1]{0}', space=sflag, size = 0x4, scoped, tag = 'scoped memory for tpu_custom_call.1']
    #allocation10 [shape = 'u8[4096]{0}', space=vmem, size = 0x1000, scoped, tag = 'output window, operand 0, single buffered']
    %12 = vsyncpa [#allocation3], 0
    %13 = vsyncpa [#allocation6], 0
    %14 = vsyncpa [#allocation9], 0
    %15 = vsyncpa [#allocation4], 0
    // Predicated region
    $region2: #{tpu_custom_call.1} parent=1 // pred_check
      _
    $region3: #{tpu_custom_call.1} parent=1 // pred_check_branch
      %17 = sbr.rel (0) target = $region5
    $region4: #{tpu_custom_call.1} parent=1 // pred_region
      %s19 = ssub.s32 128, 128
      %20 = vsyncadd [#allocation3], %s19
      %s22 = sshll.u32 [#allocation2], 4
      %s23 = int_to_ptr.vmem [resolvable:$true] %s22
      %25 = dma.hbm_to_vmem [thread:$0]  %s0, 128, %s23, [#allocation3]
    $region5: #{tpu_custom_call.1} parent=1 // pred_fallthru
      _
    // Predicated region
    $region6: #{tpu_custom_call.1} parent=1 // pred_check
      _
    $region7: #{tpu_custom_call.1} parent=1 // pred_check_branch
      %27 = sbr.rel (0) target = $region9
    $region8: #{tpu_custom_call.1} parent=1 // pred_region
      %s29 = ssub.s32 1024, 1024
      %30 = vsyncadd [#allocation6], %s29
      %s31 = sshll.u32 [#allocation5], 4
      %s32 = int_to_ptr.vmem [resolvable:$true] %s31
      %37 = dma.hbm_to_vmem [thread:$0]  %s1, 1024, %s32, [#allocation6], 64, 64, 4
    $region9: #{tpu_custom_call.1} parent=1 // pred_fallthru
      _
    // Predicated region
    $region10: #{tpu_custom_call.1} parent=1 // pred_check
      _
    $region11: #{tpu_custom_call.1} parent=1 // pred_check_branch
      %39 = sbr.rel (0) target = $region13
    $region12: #{tpu_custom_call.1} parent=1 // pred_region
      _
    $region13: #{tpu_custom_call.1} parent=1 // pred_fallthru
      _
    // Predicated region
    $region14: #{tpu_custom_call.1} parent=1 // pred_check
      _
    $region15: #{tpu_custom_call.1} parent=1 // pred_check_branch
      %41 = sbr.rel (0) target = $region17
    $region16: #{tpu_custom_call.1} parent=1 // pred_region
      %s43 = ssub.s32 1024, 1024
      %44 = vsyncadd [#allocation6], %s43
      %s45 = sshll.u32 [#allocation7], 4
      %s46 = int_to_ptr.vmem [resolvable:$true] %s45
      %51 = dma.hbm_to_vmem [thread:$0]  %s3, 1024, %s46, [#allocation6], 64, 64, 4
    $region17: #{tpu_custom_call.1} parent=1 // pred_fallthru
      _
    // Predicated region
    $region18: #{tpu_custom_call.1} parent=1 // pred_check
      _
    $region19: #{tpu_custom_call.1} parent=1 // pred_check_branch
      %53 = sbr.rel (0) target = $region21
    $region20: #{tpu_custom_call.1} parent=1 // pred_region
      _
    $region21: #{tpu_custom_call.1} parent=1 // pred_fallthru
      _
    // Predicated region
    $region22: #{tpu_custom_call.1} parent=1 // pred_check
      _
    $region23: #{tpu_custom_call.1} parent=1 // pred_check_branch
      %55 = sbr.rel (0) target = $region25
    $region24: #{tpu_custom_call.1} parent=1 // pred_region
      %s57 = ssub.s32 1024, 1024
      %58 = vsyncadd [#allocation9], %s57
      %s59 = sshll.u32 [#allocation8], 4
      %s60 = int_to_ptr.vmem [resolvable:$true] %s59
      %65 = dma.hbm_to_vmem [thread:$0]  %s5, 1024, %s60, [#allocation9], 64, 64, 4
    $region25: #{tpu_custom_call.1} parent=1 // pred_fallthru
      _
    // Predicated region
    $region26: #{tpu_custom_call.1} parent=1 // pred_check
      _
    $region27: #{tpu_custom_call.1} parent=1 // pred_check_branch
      %67 = sbr.rel (0) target = $region29
    $region28: #{tpu_custom_call.1} parent=1 // pred_region
      _
    $region29: #{tpu_custom_call.1} parent=1 // pred_fallthru
      _
    // Predicated region
    $region30: #{tpu_custom_call.1} parent=1 // pred_check
      _
    $region31: #{tpu_custom_call.1} parent=1 // pred_check_branch
      %69 = sbr.rel (0) target = $region33
    $region32: #{tpu_custom_call.1} parent=1 // pred_region
      %70 = dma.done [#allocation3], 128
    $region33: #{tpu_custom_call.1} parent=1 // pred_fallthru
      _
    // Predicated region
    $region34: #{tpu_custom_call.1} parent=1 // pred_check
      _
    $region35: #{tpu_custom_call.1} parent=1 // pred_check_branch
      %72 = sbr.rel (0) target = $region37
    $region36: #{tpu_custom_call.1} parent=1 // pred_region
      %73 = dma.done [#allocation6], 1024
    $region37: #{tpu_custom_call.1} parent=1 // pred_fallthru
      _
    // Predicated region
    $region38: #{tpu_custom_call.1} parent=1 // pred_check
      _
    $region39: #{tpu_custom_call.1} parent=1 // pred_check_branch
      %75 = sbr.rel (0) target = $region41
    $region40: #{tpu_custom_call.1} parent=1 // pred_region
      %76 = dma.done [#allocation6], 1024
    $region41: #{tpu_custom_call.1} parent=1 // pred_fallthru
      _
    // Predicated region
    $region42: #{tpu_custom_call.1} parent=1 // pred_check
      _
    $region43: #{tpu_custom_call.1} parent=1 // pred_check_branch
      %78 = sbr.rel (0) target = $region45
    $region44: #{tpu_custom_call.1} parent=1 // pred_region
      %79 = dma.done [#allocation9], 1024
    $region45: #{tpu_custom_call.1} parent=1 // pred_fallthru
      _
    %v81 = vld [vmem:[#allocation2] sm:$0xff]
    %v82 = vmul.f32 %v81, 0.5
    %v83 = vmul.f32 %v81, 0.70710677
    %v84 = verf.f32.pop %v83
    %v85 = vadd.f32 %v84, 1.0
    %v86 = vmul.f32 %v82, %v85
    %v87 = vpack.c.bf16 %v86, %v86
    %v88 = vld [vmem:[#allocation5] sm:$0xf]
    %v89 = vld [vmem:[#allocation5 + $0x4] sm:$0xf]
    %v90 = vld [vmem:[#allocation5 + $0x8] sm:$0xf]
    %v91 = vld [vmem:[#allocation5 + $0xc] sm:$0xf]
    %v92 = vld [vmem:[#allocation5 + $0x10] sm:$0xf]
    %v93 = vld [vmem:[#allocation5 + $0x14] sm:$0xf]
    %v94 = vld [vmem:[#allocation5 + $0x18] sm:$0xf]
    %v95 = vld [vmem:[#allocation5 + $0x1c] sm:$0xf]
    %v96 = vld [vmem:[#allocation5 + $0x20] sm:$0xf]
    %v97 = vld [vmem:[#allocation5 + $0x24] sm:$0xf]
    %v98 = vld [vmem:[#allocation5 + $0x28] sm:$0xf]
    %v99 = vld [vmem:[#allocation5 + $0x2c] sm:$0xf]
    %v100 = vld [vmem:[#allocation5 + $0x30] sm:$0xf]
    %v101 = vld [vmem:[#allocation5 + $0x34] sm:$0xf]
    %v102 = vld [vmem:[#allocation5 + $0x38] sm:$0xf]
    %v103 = vld [vmem:[#allocation5 + $0x3c] sm:$0xf]
    %v104 = vld [vmem:[%s2] sm:$0x1]
    %v106 = vlaneseq
    %v107 = vshrl.u32 %v106, 7
    %v108 = vsub.s32 0, %v107
    %v109 = vrot.slane %v104, %v108
    %v127 = vunpack.c.l.b16 %v88
    %v128 = vunpack.c.l.b16 %v89
    %v129 = vunpack.c.l.b16 %v90
    %v130 = vunpack.c.l.b16 %v91
    %v131 = vunpack.c.l.b16 %v92
    %v132 = vunpack.c.l.b16 %v93
    %v133 = vunpack.c.l.b16 %v94
    %v134 = vunpack.c.l.b16 %v95
    %v135 = vunpack.c.l.b16 %v96
    %v136 = vunpack.c.l.b16 %v97
    %v137 = vunpack.c.l.b16 %v98
    %v138 = vunpack.c.l.b16 %v99
    %v139 = vunpack.c.l.b16 %v100
    %v140 = vunpack.c.l.b16 %v101
    %v141 = vunpack.c.l.b16 %v102
    %v142 = vunpack.c.l.b16 %v103
    %v143 = vpack.c.b16 %v128, %v127
    %v144 = vpack.c.b16 %v130, %v129
    %v145 = vpack.c.b16 %v132, %v131
    %v146 = vpack.c.b16 %v134, %v133
    %v147 = vpack.c.b16 %v136, %v135
    %v148 = vpack.c.b16 %v138, %v137
    %v149 = vpack.c.b16 %v140, %v139
    %v150 = vpack.c.b16 %v142, %v141
    %159 = vmatprep.subr.bf16.mxu0 0
    %160 = vmatpush1.bf16.msra.mxu0 %v143
    %161 = vmatprep.subr.bf16.mxu0 0
    %162 = vmatpush1.bf16.msra.mxu0 %v144
    %163 = vmatprep.subr.bf16.mxu0 0
    %164 = vmatpush1.bf16.msra.mxu0 %v145
    %165 = vmatprep.subr.bf16.mxu0 0
    %166 = vmatpush1.bf16.msra.mxu0 %v146
    %167 = vmatprep.subr.bf16.mxu0 0
    %168 = vmatpush1.bf16.msra.mxu0 %v147
    %169 = vmatprep.subr.bf16.mxu0 0
    %170 = vmatpush1.bf16.msra.mxu0 %v148
    %171 = vmatprep.subr.bf16.mxu0 0
    %172 = vmatpush1.bf16.msra.mxu0 %v149
    %173 = vmatprep.subr.bf16.mxu0 0
    %174 = vmatpush1.bf16.msra.mxu0 %v150
    %175 = vmatprep.subr.bf16.mxu0 0
    %176 = vmatpush1.bf16.msra.mxu0 0
    %177 = vmatprep.subr.bf16.mxu0 0
    %178 = vmatpush1.bf16.msra.mxu0 0
    %179 = vmatprep.subr.bf16.mxu0 0
    %180 = vmatpush1.bf16.msra.mxu0 0
    %181 = vmatprep.subr.bf16.mxu0 0
    %182 = vmatpush1.bf16.msra.mxu0 0
    %183 = vmatprep.subr.bf16.mxu0 0
    %184 = vmatpush1.bf16.msra.mxu0 0
    %185 = vmatprep.subr.bf16.mxu0 0
    %186 = vmatpush1.bf16.msra.mxu0 0
    %187 = vmatprep.subr.bf16.mxu0 0
    %188 = vmatpush1.bf16.msra.mxu0 0
    %189 = vmatprep.subr.bf16.mxu0 0
    %190 = vmatpush1.bf16.msra.mxu0 0
    %191 = vmatprep.mubr.bf16.mxu0 0
    %192 = vmatmul.mubr.bf16.gmra.mrb[0].mxu0 %v87
    %v193 = vpop.f32.mrb[0].mxu0
    %v194 = vadd.f32 %v109, %v193
    %v195 = vpop.f32.mrb[0].mxu0
    %v196 = vpop.f32.mrb[0].mxu0
    %v197 = vpop.f32.mrb[0].mxu0
    %198 = vdwg.mxu0
    %v199 = vmul.f32 %v194, 0.5
    %v200 = vmul.f32 %v194, 0.70710677
    %v201 = verf.f32.pop %v200
    %v202 = vadd.f32 %v201, 1.0
    %v203 = vmul.f32 %v199, %v202
    %v204 = vpack.c.bf16 %v203, %v203
    %v205 = vld [vmem:[#allocation7] sm:$0xf]
    %v206 = vld [vmem:[#allocation7 + $0x4] sm:$0xf]
    %v207 = vld [vmem:[#allocation7 + $0x8] sm:$0xf]
    %v208 = vld [vmem:[#allocation7 + $0xc] sm:$0xf]
    %v209 = vld [vmem:[#allocation7 + $0x10] sm:$0xf]
    %v210 = vld [vmem:[#allocation7 + $0x14] sm:$0xf]
    %v211 = vld [vmem:[#allocation7 + $0x18] sm:$0xf]
    %v212 = vld [vmem:[#allocation7 + $0x1c] sm:$0xf]
    %v213 = vld [vmem:[#allocation7 + $0x20] sm:$0xf]
    %v214 = vld [vmem:[#allocation7 + $0x24] sm:$0xf]
    %v215 = vld [vmem:[#allocation7 + $0x28] sm:$0xf]
    %v216 = vld [vmem:[#allocation7 + $0x2c] sm:$0xf]
    %v217 = vld [vmem:[#allocation7 + $0x30] sm:$0xf]
    %v218 = vld [vmem:[#allocation7 + $0x34] sm:$0xf]
    %v219 = vld [vmem:[#allocation7 + $0x38] sm:$0xf]
    %v220 = vld [vmem:[#allocation7 + $0x3c] sm:$0xf]
    %v221 = vld [vmem:[%s4] sm:$0x1]
    %v223 = vlaneseq
    %v224 = vshrl.u32 %v223, 7
    %v225 = vsub.s32 0, %v224
    %v226 = vrot.slane %v221, %v225
    %v244 = vunpack.c.l.b16 %v205
    %v245 = vunpack.c.l.b16 %v206
    %v246 = vunpack.c.l.b16 %v207
    %v247 = vunpack.c.l.b16 %v208
    %v248 = vunpack.c.l.b16 %v209
    %v249 = vunpack.c.l.b16 %v210
    %v250 = vunpack.c.l.b16 %v211
    %v251 = vunpack.c.l.b16 %v212
    %v252 = vunpack.c.l.b16 %v213
    %v253 = vunpack.c.l.b16 %v214
    %v254 = vunpack.c.l.b16 %v215
    %v255 = vunpack.c.l.b16 %v216
    %v256 = vunpack.c.l.b16 %v217
    %v257 = vunpack.c.l.b16 %v218
    %v258 = vunpack.c.l.b16 %v219
    %v259 = vunpack.c.l.b16 %v220
    %v260 = vpack.c.b16 %v245, %v244
    %v261 = vpack.c.b16 %v247, %v246
    %v262 = vpack.c.b16 %v249, %v248
    %v263 = vpack.c.b16 %v251, %v250
    %v264 = vpack.c.b16 %v253, %v252
    %v265 = vpack.c.b16 %v255, %v254
    %v266 = vpack.c.b16 %v257, %v256
    %v267 = vpack.c.b16 %v259, %v258
    %276 = vmatprep.subr.bf16.mxu0 0
    %277 = vmatpush1.bf16.msra.mxu0 %v260
    %278 = vmatprep.subr.bf16.mxu0 0
    %279 = vmatpush1.bf16.msra.mxu0 %v261
    %280 = vmatprep.subr.bf16.mxu0 0
    %281 = vmatpush1.bf16.msra.mxu0 %v262
    %282 = vmatprep.subr.bf16.mxu0 0
    %283 = vmatpush1.bf16.msra.mxu0 %v263
    %284 = vmatprep.subr.bf16.mxu0 0
    %285 = vmatpush1.bf16.msra.mxu0 %v264
    %286 = vmatprep.subr.bf16.mxu0 0
    %287 = vmatpush1.bf16.msra.mxu0 %v265
    %288 = vmatprep.subr.bf16.mxu0 0
    %289 = vmatpush1.bf16.msra.mxu0 %v266
    %290 = vmatprep.subr.bf16.mxu0 0
    %291 = vmatpush1.bf16.msra.mxu0 %v267
    %292 = vmatprep.subr.bf16.mxu0 0
    %293 = vmatpush1.bf16.msra.mxu0 0
    %294 = vmatprep.subr.bf16.mxu0 0
    %295 = vmatpush1.bf16.msra.mxu0 0
    %296 = vmatprep.subr.bf16.mxu0 0
    %297 = vmatpush1.bf16.msra.mxu0 0
    %298 = vmatprep.subr.bf16.mxu0 0
    %299 = vmatpush1.bf16.msra.mxu0 0
    %300 = vmatprep.subr.bf16.mxu0 0
    %301 = vmatpush1.bf16.msra.mxu0 0
    %302 = vmatprep.subr.bf16.mxu0 0
    %303 = vmatpush1.bf16.msra.mxu0 0
    %304 = vmatprep.subr.bf16.mxu0 0
    %305 = vmatpush1.bf16.msra.mxu0 0
    %306 = vmatprep.subr.bf16.mxu0 0
    %307 = vmatpush1.bf16.msra.mxu0 0
    %308 = vmatprep.mubr.bf16.mxu0 0
    %309 = vmatmul.mubr.bf16.gmra.mrb[0].mxu0 %v204
    %v310 = vpop.f32.mrb[0].mxu0
    %v311 = vadd.f32 %v226, %v310
    %v312 = vpop.f32.mrb[0].mxu0
    %v313 = vpop.f32.mrb[0].mxu0
    %v314 = vpop.f32.mrb[0].mxu0
    %315 = vdwg.mxu0
    %v316 = vmul.f32 %v311, 0.5
    %v317 = vmul.f32 %v311, 0.70710677
    %v318 = verf.f32.pop %v317
    %v319 = vadd.f32 %v318, 1.0
    %v320 = vmul.f32 %v316, %v319
    %v321 = vpack.c.bf16 %v320, %v320
    %v322 = vld [vmem:[#allocation8] sm:$0xf]
    %v323 = vld [vmem:[#allocation8 + $0x4] sm:$0xf]
    %v324 = vld [vmem:[#allocation8 + $0x8] sm:$0xf]
    %v325 = vld [vmem:[#allocation8 + $0xc] sm:$0xf]
    %v326 = vld [vmem:[#allocation8 + $0x10] sm:$0xf]
    %v327 = vld [vmem:[#allocation8 + $0x14] sm:$0xf]
    %v328 = vld [vmem:[#allocation8 + $0x18] sm:$0xf]
    %v329 = vld [vmem:[#allocation8 + $0x1c] sm:$0xf]
    %v330 = vld [vmem:[#allocation8 + $0x20] sm:$0xf]
    %v331 = vld [vmem:[#allocation8 + $0x24] sm:$0xf]
    %v332 = vld [vmem:[#allocation8 + $0x28] sm:$0xf]
    %v333 = vld [vmem:[#allocation8 + $0x2c] sm:$0xf]
    %v334 = vld [vmem:[#allocation8 + $0x30] sm:$0xf]
    %v335 = vld [vmem:[#allocation8 + $0x34] sm:$0xf]
    %v336 = vld [vmem:[#allocation8 + $0x38] sm:$0xf]
    %v337 = vld [vmem:[#allocation8 + $0x3c] sm:$0xf]
    %v338 = vld [vmem:[%s6] sm:$0x1]
    %v340 = vlaneseq
    %v341 = vshrl.u32 %v340, 7
    %v342 = vsub.s32 0, %v341
    %v343 = vrot.slane %v338, %v342
    %v361 = vunpack.c.l.b16 %v322
    %v362 = vunpack.c.l.b16 %v323
    %v363 = vunpack.c.l.b16 %v324
    %v364 = vunpack.c.l.b16 %v325
    %v365 = vunpack.c.l.b16 %v326
    %v366 = vunpack.c.l.b16 %v327
    %v367 = vunpack.c.l.b16 %v328
    %v368 = vunpack.c.l.b16 %v329
    %v369 = vunpack.c.l.b16 %v330
    %v370 = vunpack.c.l.b16 %v331
    %v371 = vunpack.c.l.b16 %v332
    %v372 = vunpack.c.l.b16 %v333
    %v373 = vunpack.c.l.b16 %v334
    %v374 = vunpack.c.l.b16 %v335
    %v375 = vunpack.c.l.b16 %v336
    %v376 = vunpack.c.l.b16 %v337
    %v377 = vpack.c.b16 %v362, %v361
    %v378 = vpack.c.b16 %v364, %v363
    %v379 = vpack.c.b16 %v366, %v365
    %v380 = vpack.c.b16 %v368, %v367
    %v381 = vpack.c.b16 %v370, %v369
    %v382 = vpack.c.b16 %v372, %v371
    %v383 = vpack.c.b16 %v374, %v373
    %v384 = vpack.c.b16 %v376, %v375
    %393 = vmatprep.subr.bf16.mxu0 0
    %394 = vmatpush1.bf16.msra.mxu0 %v377
    %395 = vmatprep.subr.bf16.mxu0 0
    %396 = vmatpush1.bf16.msra.mxu0 %v378
    %397 = vmatprep.subr.bf16.mxu0 0
    %398 = vmatpush1.bf16.msra.mxu0 %v379
    %399 = vmatprep.subr.bf16.mxu0 0
    %400 = vmatpush1.bf16.msra.mxu0 %v380
    %401 = vmatprep.subr.bf16.mxu0 0
    %402 = vmatpush1.bf16.msra.mxu0 %v381
    %403 = vmatprep.subr.bf16.mxu0 0
    %404 = vmatpush1.bf16.msra.mxu0 %v382
    %405 = vmatprep.subr.bf16.mxu0 0
    %406 = vmatpush1.bf16.msra.mxu0 %v383
    %407 = vmatprep.subr.bf16.mxu0 0
    %408 = vmatpush1.bf16.msra.mxu0 %v384
    %409 = vmatprep.subr.bf16.mxu0 0
    %410 = vmatpush1.bf16.msra.mxu0 0
    %411 = vmatprep.subr.bf16.mxu0 0
    %412 = vmatpush1.bf16.msra.mxu0 0
    %413 = vmatprep.subr.bf16.mxu0 0
    %414 = vmatpush1.bf16.msra.mxu0 0
    %415 = vmatprep.subr.bf16.mxu0 0
    %416 = vmatpush1.bf16.msra.mxu0 0
    %417 = vmatprep.subr.bf16.mxu0 0
    %418 = vmatpush1.bf16.msra.mxu0 0
    %419 = vmatprep.subr.bf16.mxu0 0
    %420 = vmatpush1.bf16.msra.mxu0 0
    %421 = vmatprep.subr.bf16.mxu0 0
    %422 = vmatpush1.bf16.msra.mxu0 0
    %423 = vmatprep.subr.bf16.mxu0 0
    %424 = vmatpush1.bf16.msra.mxu0 0
    %425 = vmatprep.mubr.bf16.mxu0 0
    %426 = vmatmul.mubr.bf16.gmra.mrb[0].mxu0 %v321
    %v427 = vpop.f32.mrb[0].mxu0
    %v428 = vadd.f32 %v343, %v427
    %v429 = vpop.f32.mrb[0].mxu0
    %v430 = vpop.f32.mrb[0].mxu0
    %v431 = vpop.f32.mrb[0].mxu0
    %432 = vdwg.mxu0
    %v433 = vadd.f32 %v428, %v81
    %434 = vst [vmem:[#allocation10] sm:$0xff] %v433
    // Predicated region
    $region46: #{tpu_custom_call.1} parent=1 // pred_check
      _
    $region47: #{tpu_custom_call.1} parent=1 // pred_check_branch
      %436 = sbr.rel (0) target = $region49
    $region48: #{tpu_custom_call.1} parent=1 // pred_region
      %s438 = ssub.s32 128, 128
      %439 = vsyncadd [#allocation4], %s438
      %s441 = sshll.u32 [#allocation10], 4
      %s442 = int_to_ptr.vmem [resolvable:$true] %s441
      %444 = dma.vmem_to_hbm [thread:$0]  %s442, 128, %s7, [#allocation4]
    $region49: #{tpu_custom_call.1} parent=1 // pred_fallthru
      _
    // Predicated region
    $region50: #{tpu_custom_call.1} parent=1 // pred_check
      _
    $region51: #{tpu_custom_call.1} parent=1 // pred_check_branch
      %446 = sbr.rel (0) target = $region53
    $region52: #{tpu_custom_call.1} parent=1 // pred_region
      %447 = dma.done [#allocation4], 128
    $region53: #{tpu_custom_call.1} parent=1 // pred_fallthru
      _
    %448 = vsyncpa [#allocation3], 1
    %449 = vsyncpa [#allocation6], 1
    %450 = vsyncpa [#allocation9], 1
    %451 = vsyncpa [#allocation4], 1

</llo_original>
